<compile_context>
chip_gen: v5e
topology: v5e:2x2
jax: 0.10.0
libtpu: 0.0.40
codegen_flags: <defaults>
</compile_context>

<pallas_src>
import functools

import jax
import jax.numpy as jnp
from jax.experimental import pallas as pl
from jax.experimental.pallas import tpu as pltpu

LANE = 128
SUBLANE = 8
EPS = 1e-8
DEFAULT_TILE_ROWS = 2048  # must be a multiple of SUBLANE


def _combined_sums_kernel(pred_ref, true_ref, sq_ref, mape_ref, *,
                          valid_rows, tile_rows):
    p = pred_ref[...].astype(jnp.float32)
    t = true_ref[...].astype(jnp.float32)
    diff = t - p

    sq = diff * diff
    # EUP reciprocal + VPU multiply instead of a full divide chain.
    mape = jnp.abs(diff) * pl.reciprocal(jnp.abs(t) + EPS, approx=False)

    if valid_rows % tile_rows != 0:
        # The last grid block is clipped at the array boundary; zero out the
        # contributions from the out-of-range (unspecified) rows.
        row = jax.lax.broadcasted_iota(jnp.int32, (tile_rows, LANE), 0)
        mask = (pl.program_id(0) * tile_rows + row) < valid_rows
        sq = jnp.where(mask, sq, 0.0)
        mape = jnp.where(mask, mape, 0.0)

    # Per-lane partial sums: collapse groups of 8 sublanes with pure VPU adds.
    groups = tile_rows // SUBLANE
    sq_ref[...] = sq.reshape(groups, SUBLANE, LANE).sum(axis=0)
    mape_ref[...] = mape.reshape(groups, SUBLANE, LANE).sum(axis=0)


def _jnp_partial_sums(p, t):
    p = p.astype(jnp.float32)
    t = t.astype(jnp.float32)
    diff = t - p
    sq = jnp.sum(diff * diff)
    mape = jnp.sum(jnp.abs(diff) / (jnp.abs(t) + EPS))
    return sq, mape


@functools.partial(jax.jit, static_argnames=("alpha", "max_tile_rows"))
def combined_loss(pred, true, alpha=0.5, max_tile_rows=DEFAULT_TILE_ROWS):
    assert max_tile_rows % SUBLANE == 0, max_tile_rows

    # Shape fix-up branch, mirroring the PyTorch module's broadcasting.
    if pred.shape != true.shape:
        if pred.ndim == 2 and true.ndim == 1:
            # TODO(synk): for large inputs feed the 1-D operand via its own
            # BlockSpec instead of materializing the broadcast in HBM.
            true = jnp.broadcast_to(true[:, None], (true.shape[0], pred.shape[1]))
        elif pred.ndim == 1 and true.ndim == 2:
            pred = jnp.broadcast_to(pred[:, None], (pred.shape[0], true.shape[1]))
    assert pred.shape == true.shape, (pred.shape, true.shape)

    n = pred.size
    p_flat = pred.reshape(-1)
    t_flat = true.reshape(-1)

    rows = n // LANE
    rows_k = (rows // SUBLANE) * SUBLANE        # rows handled by the kernel
    kern_elems = rows_k * LANE

    sq_sum = jnp.float32(0.0)
    mape_sum = jnp.float32(0.0)

    if rows_k > 0:
        tile_rows = min(max_tile_rows, rows_k)  # multiple of 8 in both cases
        num_blocks = pl.cdiv(rows_k, tile_rows)

        if kern_elems == n:
            p_main, t_main = p_flat, t_flat     # free reshape, no copy
        else:
            p_main, t_main = p_flat[:kern_elems], t_flat[:kern_elems]
        p2 = p_main.reshape(rows_k, LANE)
        t2 = t_main.reshape(rows_k, LANE)

        kernel = functools.partial(
            _combined_sums_kernel, valid_rows=rows_k, tile_rows=tile_rows)

        sq_part, mape_part = pl.pallas_call(
            kernel,
            out_shape=(
                jax.ShapeDtypeStruct((num_blocks, SUBLANE, LANE), jnp.float32),
                jax.ShapeDtypeStruct((num_blocks, SUBLANE, LANE), jnp.float32),
            ),
            grid_spec=pltpu.PrefetchScalarGridSpec(
                num_scalar_prefetch=0,
                grid=(num_blocks,),
                in_specs=[
                    pl.BlockSpec((tile_rows, LANE), lambda i: (i, 0)),
                    pl.BlockSpec((tile_rows, LANE), lambda i: (i, 0)),
                ],
                out_specs=[
                    pl.BlockSpec((None, SUBLANE, LANE), lambda i: (i, 0, 0)),
                    pl.BlockSpec((None, SUBLANE, LANE), lambda i: (i, 0, 0)),
                ],
            ),
            compiler_params=pltpu.CompilerParams(
                dimension_semantics=("parallel",)),
        )(p2, t2)

        sq_sum = sq_sum + jnp.sum(sq_part)
        mape_sum = mape_sum + jnp.sum(mape_part)

    if kern_elems < n:
        # Tiny unaligned tail (< 8*128 + 128 elements): plain jnp.
        tsq, tmape = _jnp_partial_sums(p_flat[kern_elems:], t_flat[kern_elems:])
        sq_sum = sq_sum + tsq
        mape_sum = mape_sum + tmape

    inv_n = jnp.float32(1.0 / n)
    mse = sq_sum * inv_n
    mape = mape_sum * inv_n
    return alpha * mse + (1.0 - alpha) * mape


def _reference(pred, true, alpha=0.5):
    if pred.shape != true.shape:
        if pred.ndim == 2 and true.ndim == 1:
            true = jnp.broadcast_to(true[:, None], (true.shape[0], pred.shape[1]))
        elif pred.ndim == 1 and true.ndim == 2:
            pred = jnp.broadcast_to(pred[:, None], (pred.shape[0], true.shape[1]))
    pred = pred.astype(jnp.float32)
    true = true.astype(jnp.float32)
    mse = jnp.mean((pred - true) ** 2)
    mape = jnp.mean(jnp.abs((true - pred) / (jnp.abs(true) + EPS)))
    return alpha * mse + (1.0 - alpha) * mape


if __name__ == "__main__":
    key = jax.random.PRNGKey(0)
    k1, k2, k3, k4, k5, k6 = jax.random.split(key, 6)

    def check(out, ref):
        out = jax.block_until_ready(out)
        assert jnp.allclose(out, ref, rtol=1e-5, atol=1e-6), (out, ref)

    # Case 1: lane-aligned (32, 64) -> single full block, no masking / tail.
    pred = jax.random.normal(k1, (32, 64), dtype=jnp.float32)
    true = jax.random.uniform(k2, (32, 64), dtype=jnp.float32,
                              minval=0.5, maxval=1.5)
    check(combined_loss(pred, true, alpha=0.5), _reference(pred, true, 0.5))

    # Case 2: multi-block grid with a clipped, masked last block.
    pred_b = jax.random.normal(k3, (48, 64), dtype=jnp.float32)
    true_b = jax.random.uniform(k4, (48, 64), dtype=jnp.float32,
                                minval=0.5, maxval=1.5)
    check(combined_loss(pred_b, true_b, alpha=0.3, max_tile_rows=16),
          _reference(pred_b, true_b, 0.3))

    # Case 3: broadcasting branch — pred is (32, 64), true is (32,).
    true_1d = jax.random.uniform(k5, (32,), dtype=jnp.float32,
                                 minval=0.5, maxval=1.5)
    check(combined_loss(pred, true_1d, alpha=0.5),
          _reference(pred, true_1d, 0.5))

    # Case 4: non-lane-aligned shape -> kernel prefix + jnp tail path.
    pred_c = jax.random.normal(k6, (37, 50), dtype=jnp.float32)
    true_c = jax.random.uniform(k2, (37, 50), dtype=jnp.float32,
                                minval=0.5, maxval=1.5)
    check(combined_loss(pred_c, true_c, alpha=0.5),
          _reference(pred_c, true_c, 0.5))

    print("KERNEL_OK")
</pallas_src>

<mosaic_0001>
module attributes {stable_mosaic.version = 11 : i64} {
  func.func @_combined_sums_kernel(%arg0: i32, %arg1: memref<16x128xf32, #tpu.memory_space<vmem>>, %arg2: memref<16x128xf32, #tpu.memory_space<vmem>>, %arg3: memref<1x8x128xf32, #tpu.memory_space<vmem>>, %arg4: memref<1x8x128xf32, #tpu.memory_space<vmem>>) attributes {dimension_semantics = [#tpu.dimension_semantics<parallel>], iteration_bounds = array<i64: 1>, scalar_prefetch = 0 : i64, scratch_operands = 0 : i64, tpu.core_type = #tpu.core_type<tc>, window_params = [{transform_indices = @transform_0, window_bounds = array<i64: 16, 128>}, {transform_indices = @transform_1, window_bounds = array<i64: 16, 128>}, {transform_indices = @transform_2, window_bounds = array<i64: 1, 8, 128>}, {transform_indices = @transform_3, window_bounds = array<i64: 1, 8, 128>}]} {
    %c0 = arith.constant 0 : index
    %c0_0 = arith.constant 0 : index
    %0 = vector.load %arg1[%c0, %c0_0] : memref<16x128xf32, #tpu.memory_space<vmem>>, vector<16x128xf32>
    %c0_1 = arith.constant 0 : index
    %c0_2 = arith.constant 0 : index
    %1 = vector.load %arg2[%c0_1, %c0_2] : memref<16x128xf32, #tpu.memory_space<vmem>>, vector<16x128xf32>
    %2 = arith.subf %1, %0 : vector<16x128xf32>
    %3 = arith.mulf %2, %2 : vector<16x128xf32>
    %4 = math.absf %2 : vector<16x128xf32>
    %5 = math.absf %1 : vector<16x128xf32>
    %cst = arith.constant 9.99999993E-9 : f32
    %6 = vector.broadcast %cst : f32 to vector<16x128xf32>
    %7 = arith.addf %5, %6 : vector<16x128xf32>
    %8 = tpu.reciprocal %7 : vector<16x128xf32> -> vector<16x128xf32>
    %9 = arith.mulf %4, %8 : vector<16x128xf32>
    %10 = vector.shape_cast %3 : vector<16x128xf32> to vector<2x8x128xf32>
    %cst_3 = arith.constant dense<0.000000e+00> : vector<8x128xf32>
    %11 = vector.multi_reduction <add>, %10, %cst_3 [0] : vector<2x8x128xf32> to vector<8x128xf32>
    %c0_4 = arith.constant 0 : index
    %c0_5 = arith.constant 0 : index
    %c0_6 = arith.constant 0 : index
    %12 = vector.load %arg3[%c0_4, %c0_5, %c0_6] : memref<1x8x128xf32, #tpu.memory_space<vmem>>, vector<1x8x128xf32>
    %13 = vector.shape_cast %12 : vector<1x8x128xf32> to vector<8x128xf32>
    %14 = vector.shape_cast %11 : vector<8x128xf32> to vector<1x8x128xf32>
    tpu.vector_store %arg3[%c0_4, %c0_5, %c0_6], %14 {strides = array<i32>} : memref<1x8x128xf32, #tpu.memory_space<vmem>>, vector<1x8x128xf32>,
    %15 = vector.shape_cast %9 : vector<16x128xf32> to vector<2x8x128xf32>
    %cst_7 = arith.constant dense<0.000000e+00> : vector<8x128xf32>
    %16 = vector.multi_reduction <add>, %15, %cst_7 [0] : vector<2x8x128xf32> to vector<8x128xf32>
    %c0_8 = arith.constant 0 : index
    %c0_9 = arith.constant 0 : index
    %c0_10 = arith.constant 0 : index
    %17 = vector.load %arg4[%c0_8, %c0_9, %c0_10] : memref<1x8x128xf32, #tpu.memory_space<vmem>>, vector<1x8x128xf32>
    %18 = vector.shape_cast %17 : vector<1x8x128xf32> to vector<8x128xf32>
    %19 = vector.shape_cast %16 : vector<8x128xf32> to vector<1x8x128xf32>
    tpu.vector_store %arg4[%c0_8, %c0_9, %c0_10], %19 {strides = array<i32>} : memref<1x8x128xf32, #tpu.memory_space<vmem>>, vector<1x8x128xf32>,
    return
  }
  func.func @transform_0(%arg0: i32) -> (i32, i32) {
    %c0_i32 = arith.constant 0 : i32
    %c0_i32_0 = arith.constant 0 : i32
    return %arg0, %c0_i32 : i32, i32
  }
  func.func @transform_1(%arg0: i32) -> (i32, i32) {
    %c0_i32 = arith.constant 0 : i32
    %c0_i32_0 = arith.constant 0 : i32
    return %arg0, %c0_i32 : i32, i32
  }
  func.func @transform_2(%arg0: i32) -> (i32, i32, i32) {
    %c0_i32 = arith.constant 0 : i32
    %c0_i32_0 = arith.constant 0 : i32
    %c0_i32_1 = arith.constant 0 : i32
    return %arg0, %c0_i32, %c0_i32_0 : i32, i32, i32
  }
  func.func @transform_3(%arg0: i32) -> (i32, i32, i32) {
    %c0_i32 = arith.constant 0 : i32
    %c0_i32_0 = arith.constant 0 : i32
    %c0_i32_1 = arith.constant 0 : i32
    return %arg0, %c0_i32, %c0_i32_0 : i32, i32, i32
  }
}

</mosaic_0001>

<llo_original>
// kernel: combined_loss.1
$region0: #{combined_loss.1}
  #allocation0 [shape = 'u32[]', space=smem, size = 0x4, offset = 0x4, fixed_abs, tag = 'smem constant byte address 0x4 - core index']
  #allocation1 [shape = 'u32[72,128]{1,0:T(1,128)}', space=vmem, size = 0x9000, scoped, tag = 'internal scratch']
  %s0 = inlined_call_operand.vmem [shape: f32[16,128], index: 0, kind: input, shape index: {}]
  %s1 = inlined_call_operand.vmem [shape: f32[16,128], index: 1, kind: input, shape index: {}]
  %s2 = inlined_call_operand.vmem [shape: f32[1,8,128], index: 2, kind: output, shape index: {0}]
  %s3 = inlined_call_operand.vmem [shape: f32[1,8,128], index: 3, kind: output, shape index: {1}]
  %4 = xla_tuple %s2, %s3
  %s5 = sld [smem:[#allocation0]]
  $region26: #{combined_loss.1} parent=0
    _
  %s7 = ssub.s32 1, %s5
  %s8 = scalar_select 0, %s7, %s5
  // Predicated region
  $region2: #{combined_loss.1} parent=0 // pred_check
    _
  $region3: #{combined_loss.1} parent=0 // pred_check_branch
    %10 = sbr.rel (0) target = $region5
  $region4: #{combined_loss.1} parent=0 // pred_region
    _
  $region5: #{combined_loss.1} parent=0 // pred_fallthru
    _
  // Predicated region
  $region6: #{combined_loss.1} parent=0 // pred_check
    _
  $region7: #{combined_loss.1} parent=0 // pred_check_branch
    %12 = sbr.rel (0) target = $region9
  $region8: #{combined_loss.1} parent=0 // pred_region
    _
  $region9: #{combined_loss.1} parent=0 // pred_fallthru
    _
  %v13 = vld [vmem:[%s0] sm:$0xff]
  %v14 = vld [vmem:[%s0 + $0x8] sm:$0xff]
  %v15 = vld [vmem:[%s1] sm:$0xff]
  %v16 = vld [vmem:[%s1 + $0x8] sm:$0xff]
  %v17 = vsub.f32 %v15, %v13
  %v18 = vsub.f32 %v16, %v14
  %v19 = vmul.f32 %v17, %v17
  %v20 = vmul.f32 %v18, %v18
  %v21 = vand.u32 2147483647, %v17
  %v22 = vand.u32 2147483647, %v18
  %v23 = vand.u32 2147483647, %v15
  %v24 = vand.u32 2147483647, %v16
  %v25 = vadd.f32 %v23, 1e-08
  %v26 = vadd.f32 %v24, 1e-08
  %v27 = vrcp.pop %v25
  %v28 = vmul.f32 %v25, %v27
  %v29 = vsub.f32 1.0, %v28
  %v30 = vmul.f32 %v27, %v29
  %v31 = vadd.f32 %v27, %v30
  %vm32 = vweird.f32 %v25
  %vm33 = vweird.f32 %v27
  %vm34 = vmor %vm32, %vm33
  %v35 = vsel %vm34, %v27, %v31
  %v36 = vand.u32 2147483647, %v25
  %vm37 = vcmp.eq.f32.partialorder %v36, 8.507059e+37
  %v38 = vand.u32 %v25, 2147483648
  %v39 = vor.u32 1.1754944e-38, %v38
  %v40 = vsel %vm37, %v39, %v35
  %v41 = vrcp.pop %v26
  %v42 = vmul.f32 %v26, %v41
  %v43 = vsub.f32 1.0, %v42
  %v44 = vmul.f32 %v41, %v43
  %v45 = vadd.f32 %v41, %v44
  %vm46 = vweird.f32 %v26
  %vm47 = vweird.f32 %v41
  %vm48 = vmor %vm46, %vm47
  %v49 = vsel %vm48, %v41, %v45
  %v50 = vand.u32 2147483647, %v26
  %vm51 = vcmp.eq.f32.partialorder %v50, 8.507059e+37
  %v52 = vand.u32 %v26, 2147483648
  %v53 = vor.u32 1.1754944e-38, %v52
  %v54 = vsel %vm51, %v53, %v49
  %v55 = vmul.f32 %v21, %v40
  %v56 = vmul.f32 %v22, %v54
  %v57 = vadd.f32 %v19, %v20
  %58 = vst [vmem:[%s2] sm:$0xff] %v57
  %v59 = vadd.f32 %v55, %v56
  %60 = vst [vmem:[%s3] sm:$0xff] %v59
  // Predicated region
  $region10: #{combined_loss.1} parent=0 // pred_check
    _
  $region11: #{combined_loss.1} parent=0 // pred_check_branch
    %62 = sbr.rel (0) target = $region13
  $region12: #{combined_loss.1} parent=0 // pred_region
    _
  $region13: #{combined_loss.1} parent=0 // pred_fallthru
    _
  // Predicated region
  $region14: #{combined_loss.1} parent=0 // pred_check
    _
  $region15: #{combined_loss.1} parent=0 // pred_check_branch
    %64 = sbr.rel (0) target = $region17
  $region16: #{combined_loss.1} parent=0 // pred_region
    _
  $region17: #{combined_loss.1} parent=0 // pred_fallthru
    _
  // Predicated region
  $region18: #{combined_loss.1} parent=0 // pred_check
    _
  $region19: #{combined_loss.1} parent=0 // pred_check_branch
    %66 = sbr.rel (0) target = $region21
  $region20: #{combined_loss.1} parent=0 // pred_region
    _
  $region21: #{combined_loss.1} parent=0 // pred_fallthru
    _
  // Predicated region
  $region22: #{combined_loss.1} parent=0 // pred_check
    _
  $region23: #{combined_loss.1} parent=0 // pred_check_branch
    %68 = sbr.rel (0) target = $region25
  $region24: #{combined_loss.1} parent=0 // pred_region
    _
  $region25: #{combined_loss.1} parent=0 // pred_fallthru
    _

</llo_original>
